<compile_context>
chip_gen: v6e
topology: v6e:2x2x1
jax: 0.10.0
libtpu: 0.0.40
codegen_flags: <defaults>
</compile_context>

<pallas_src>
import math

import jax
import jax.numpy as jnp
from jax import lax
from jax.experimental import pallas as pl
from jax.experimental.pallas import tpu as pltpu


def _round_up(x, m):
    return ((x + m - 1) // m) * m


def _pick_tiles(m, k, n, budget_bytes, in_item, out_item, may_scratch):
    """MXU/lane-aligned tiles; tn spans the full output width when possible so
    the adj matrix streams from HBM exactly once."""
    n_pad = _round_up(n, 128)

    def ws(tm_, tk_, tn_):
        return (2 * tm_ * tk_ * in_item        # adj tiles    (double-buffered)
                + 2 * tk_ * tn_ * in_item      # weight tiles (double-buffered)
                + 2 * tm_ * tn_ * out_item     # output tiles
                + 2 * tn_ * 4                  # bias tiles (f32)
                + (tm_ * tn_ * 4 if may_scratch else 0))

    # Output width: full (128-rounded) n so the j grid axis has extent 1 and
    # adj is read from HBM exactly once (capped to keep the weight panel sane).
    tn = min(n_pad, 2048)
    # Contraction: full k when it fits (no K grid axis, no tail mask);
    # otherwise a 256-granular slab (matches v6e/v7x 2x256x256 MXU cadence).
    tk = k if k <= 2048 else 2048
    # Rows: as many as fit (sublane granular).
    tm = min(_round_up(m, 8), 1024)

    # Shrink until the double-buffered working set fits:
    # rows first (weight panel stays resident), then K, then output width.
    while ws(tm, tk, tn) > budget_bytes and tm > 128:
        tm = max(128, _round_up(tm // 2, 8))
    while ws(tm, tk, tn) > budget_bytes and tk > 256:
        tk = max(256, _round_up(tk // 2, 128))
    while ws(tm, tk, tn) > budget_bytes and tn > 128:
        tn = max(128, _round_up(tn // 2, 128))
    while ws(tm, tk, tn) > budget_bytes and tk > 128:
        tk = max(128, _round_up(tk // 2, 128))
    while ws(tm, tk, tn) > budget_bytes and tm > 8:
        tm = max(8, _round_up(tm // 2, 8))

    # v7x has 2 TensorCores: give the parallel axes extent >= 2 for tall-enough
    # problems so both cores get work (one extra grid step elsewhere is noise).
    if m >= 256 and pl.cdiv(m, tm) == 1 and pl.cdiv(n, tn) == 1:
        tm = _round_up(pl.cdiv(m, 2), 8)

    return tm, tn, tk


def _make_kernel(nk, k_rem, use_scratch):
    """Build the matmul+bias kernel.

    nk:          static K-grid extent.
    k_rem:       valid K elements in the last K block (0 => last block full).
    use_scratch: accumulate in f32 VMEM scratch (non-f32 outputs) instead of
                 directly into the resident output block.
    """

    def _dot(a_ref, w_ref, mask_tail):
        a = a_ref[...]
        w = w_ref[...]
        if mask_tail and k_rem:
            # Zero the K tail in BOTH operands so out-of-bounds garbage
            # (possibly NaN/Inf) can never reach in-range outputs.
            a = jnp.where(
                lax.broadcasted_iota(jnp.int32, a.shape, 1) < k_rem,
                a, jnp.zeros_like(a))
            w = jnp.where(
                lax.broadcasted_iota(jnp.int32, w.shape, 0) < k_rem,
                w, jnp.zeros_like(w))
        return jnp.dot(a, w, preferred_element_type=jnp.float32)

    def kernel(a_ref, w_ref, b_ref, out_ref, *scratch):
        if nk == 1:
            acc = _dot(a_ref, w_ref, True) + b_ref[...].astype(jnp.float32)
            out_ref[...] = acc.astype(out_ref.dtype)
            return

        acc_ref = scratch[0] if use_scratch else out_ref
        kk = pl.program_id(2)
        last = nk - 1

        @pl.when(kk == 0)
        def _init():
            acc_ref[...] = _dot(a_ref, w_ref, False)

        @pl.when(jnp.logical_and(kk > 0, kk < last))
        def _accumulate():
            acc_ref[...] += _dot(a_ref, w_ref, False)

        @pl.when(kk == last)
        def _finalize():
            total = (acc_ref[...] + _dot(a_ref, w_ref, True)
                     + b_ref[...].astype(jnp.float32))
            out_ref[...] = total.astype(out_ref.dtype)

    return kernel


def gnn_layer_init(adj, weight, bias=None, *, tm=None, tn=None, tk=None):
    """output = adj @ weight (+ bias) as a tiled Pallas TPU matmul."""
    m, k = adj.shape
    k2, n = weight.shape
    assert k == k2, "adj / weight contraction dims must match"
    out_dtype = jnp.result_type(adj.dtype, weight.dtype)
    in_item = max(jnp.dtype(adj.dtype).itemsize, jnp.dtype(weight.dtype).itemsize)
    out_item = jnp.dtype(out_dtype).itemsize

    # Generation-aware VMEM sizing (v5e/v6e: 128 MiB, v7x: 64 MiB per core).
    try:
        vmem_cap = int(getattr(pltpu.get_tpu_info(), "vmem_capacity_bytes",
                               64 * 1024 * 1024))
    except Exception:  # pragma: no cover
        vmem_cap = 64 * 1024 * 1024
    budget = (vmem_cap * 2) // 5                       # ~40% for pipelined tiles

    auto_tm, auto_tn, auto_tk = _pick_tiles(
        m, k, n, budget, in_item, out_item,
        may_scratch=(out_dtype != jnp.float32))
    tm = tm or auto_tm
    tn = tn or auto_tn
    tk = tk or auto_tk
    assert tm % 8 == 0 or tm == m, "tm must be a multiple of 8 (or == num rows)"
    assert tn % 128 == 0 or tn == n, "tn must be a multiple of 128 (or == out_features)"
    assert tk % 128 == 0 or tk == k, "tk must be a multiple of 128 (or == in_features)"

    grid = (pl.cdiv(m, tm), pl.cdiv(n, tn), pl.cdiv(k, tk))
    nk = grid[2]
    k_rem = k % tk                      # 0 -> last K block is full (no masking)
    use_scratch = (out_dtype != jnp.float32) and nk > 1

    # Bias stays f32 through the in-kernel add (matches PyTorch f32 add).
    if bias is None:
        b2d = jnp.zeros((1, n), jnp.float32)
    else:
        b2d = bias.reshape(1, n).astype(jnp.float32)

    est = (2 * tm * tk * in_item + 2 * tk * tn * in_item
           + 2 * tm * tn * out_item + 2 * tn * 4
           + (tm * tn * 4 if use_scratch else 0))
    vmem_limit = int(min(max(est * 3 // 2, 16 * 1024 * 1024),
                         (vmem_cap * 5) // 8))

    cost = pl.CostEstimate(
        flops=2 * m * k * n,
        bytes_accessed=(m * k * in_item + k * n * in_item
                        + m * n * out_item + n * 4),
        transcendentals=0)

    kernel = _make_kernel(nk, k_rem, use_scratch)
    scratch = [pltpu.VMEM((tm, tn), jnp.float32)] if use_scratch else []

    return pl.pallas_call(
        kernel,
        out_shape=jax.ShapeDtypeStruct((m, n), out_dtype),
        grid_spec=pltpu.PrefetchScalarGridSpec(
            num_scalar_prefetch=0,
            grid=grid,
            in_specs=[
                pl.BlockSpec((tm, tk), lambda i, j, kk: (i, kk)),
                pl.BlockSpec((tk, tn), lambda i, j, kk: (kk, j)),
                pl.BlockSpec((1, tn), lambda i, j, kk: (0, j)),
            ],
            out_specs=pl.BlockSpec((tm, tn), lambda i, j, kk: (i, j)),
            scratch_shapes=scratch,
        ),
        compiler_params=pltpu.CompilerParams(
            dimension_semantics=("parallel", "parallel", "arbitrary"),
            vmem_limit_bytes=vmem_limit,
        ),
        cost_estimate=cost,
    )(adj, weight, b2d)


if __name__ == "__main__":
    # Shapes consistent with the module: N nodes, in/out features.
    N_NODES, IN_FEATURES, OUT_FEATURES = 128, 64, 128

    key = jax.random.PRNGKey(0)
    k_adj, k_w, k_b, k_adj2, k_w2, k_b2 = jax.random.split(key, 6)

    # reset_parameters(): uniform(-stdv, stdv) with stdv = 1/sqrt(out_features).
    stdv = 1.0 / math.sqrt(OUT_FEATURES)
    weight = jax.random.uniform(k_w, (IN_FEATURES, OUT_FEATURES), jnp.float32,
                                minval=-stdv, maxval=stdv)
    bias = jax.random.uniform(k_b, (OUT_FEATURES,), jnp.float32,
                              minval=-stdv, maxval=stdv)
    # Synthetic (dense) adjacency; torch.spmm on its sparse form is the same math.
    # TODO(synk): sparse adjacency storage is kept dense here (identical math).
    adj = jax.random.uniform(k_adj, (N_NODES, IN_FEATURES), jnp.float32)

    out = jax.block_until_ready(gnn_layer_init(adj, weight, bias))
    ref = jnp.dot(adj, weight, precision=jax.lax.Precision.HIGHEST) + bias[None, :]
    assert out.shape == (N_NODES, OUT_FEATURES)
    assert bool(jnp.allclose(out, ref, atol=2e-2, rtol=2e-2)), "mismatch (bias)"

    # bias=None path.
    out_nb = jax.block_until_ready(gnn_layer_init(adj, weight, None))
    ref_nb = jnp.dot(adj, weight, precision=jax.lax.Precision.HIGHEST)
    assert bool(jnp.allclose(out_nb, ref_nb, atol=2e-2, rtol=2e-2)), "mismatch (no bias)"

    # Non-tile-multiple shapes, auto tiles: exercises partial M/N output blocks
    # with no wrapper-side padding or slicing.
    M2, K2, N2 = 200, 320, 192
    adj2 = jax.random.uniform(k_adj2, (M2, K2), jnp.float32)
    w2 = jax.random.uniform(k_w2, (K2, N2), jnp.float32, minval=-stdv, maxval=stdv)
    b2 = jax.random.uniform(k_b2, (N2,), jnp.float32, minval=-stdv, maxval=stdv)
    ref2 = jnp.dot(adj2, w2, precision=jax.lax.Precision.HIGHEST) + b2[None, :]

    out2a = jax.block_until_ready(gnn_layer_init(adj2, w2, b2))
    assert out2a.shape == (M2, N2)
    assert bool(jnp.allclose(out2a, ref2, atol=2e-2, rtol=2e-2)), "mismatch (auto tiles)"

    # Same shapes with explicit small tiles: exercises the multi-step K grid,
    # in-kernel K-tail masking, and direct accumulation into the out block.
    out2b = jax.block_until_ready(
        gnn_layer_init(adj2, w2, b2, tm=128, tn=128, tk=128))
    assert bool(jnp.allclose(out2b, ref2, atol=2e-2, rtol=2e-2)), "mismatch (K-tiled)"

    print("KERNEL_OK")
</pallas_src>

<mosaic_0001>
module attributes {stable_mosaic.version = 11 : i64} {
  func.func @kernel(%arg0: i32, %arg1: i32, %arg2: i32, %arg3: memref<128x64xf32, #tpu.memory_space<vmem>>, %arg4: memref<64x128xf32, #tpu.memory_space<vmem>>, %arg5: memref<1x128xf32, #tpu.memory_space<vmem>>, %arg6: memref<128x128xf32, #tpu.memory_space<vmem>>) attributes {dimension_semantics = [#tpu.dimension_semantics<parallel>, #tpu.dimension_semantics<parallel>, #tpu.dimension_semantics<arbitrary>], iteration_bounds = array<i64: 1, 1, 1>, scalar_prefetch = 0 : i64, scratch_operands = 0 : i64, tpu.core_type = #tpu.core_type<tc>, window_params = [{transform_indices = @transform_0, window_bounds = array<i64: 128, 64>}, {transform_indices = @transform_1, window_bounds = array<i64: 64, 128>}, {transform_indices = @transform_2, window_bounds = array<i64: 1, 128>}, {transform_indices = @transform_3, window_bounds = array<i64: 128, 128>}]} {
    %c0 = arith.constant 0 : index
    %c0_0 = arith.constant 0 : index
    %0 = vector.load %arg3[%c0, %c0_0] : memref<128x64xf32, #tpu.memory_space<vmem>>, vector<128x64xf32>
    %c0_1 = arith.constant 0 : index
    %c0_2 = arith.constant 0 : index
    %1 = vector.load %arg4[%c0_1, %c0_2] : memref<64x128xf32, #tpu.memory_space<vmem>>, vector<64x128xf32>
    %cst = arith.constant dense<0.000000e+00> : vector<128x128xf32>
    %2 = tpu.matmul %0, %1, %cst {dimension_numbers = #tpu.dot_dimension_numbers<[1], [0], [0], [1], [0, 0, 1, 1], [], []>} : vector<128x64xf32>, vector<64x128xf32>, vector<128x128xf32> -> vector<128x128xf32>
    %c0_3 = arith.constant 0 : index
    %c0_4 = arith.constant 0 : index
    %3 = vector.load %arg5[%c0_3, %c0_4] : memref<1x128xf32, #tpu.memory_space<vmem>>, vector<1x128xf32>
    %4 = vector.broadcast %3 : vector<1x128xf32> to vector<128x128xf32>
    %5 = arith.addf %2, %4 : vector<128x128xf32>
    %c0_5 = arith.constant 0 : index
    %c0_6 = arith.constant 0 : index
    %6 = vector.load %arg6[%c0_5, %c0_6] : memref<128x128xf32, #tpu.memory_space<vmem>>, vector<128x128xf32>
    tpu.vector_store %arg6[%c0_5, %c0_6], %5 {strides = array<i32>} : memref<128x128xf32, #tpu.memory_space<vmem>>, vector<128x128xf32>,
    return
  }
  func.func @transform_0(%arg0: i32, %arg1: i32, %arg2: i32) -> (i32, i32) {
    %c0_i32 = arith.constant 0 : i32
    return %arg0, %arg2 : i32, i32
  }
  func.func @transform_1(%arg0: i32, %arg1: i32, %arg2: i32) -> (i32, i32) {
    %c0_i32 = arith.constant 0 : i32
    return %arg2, %arg1 : i32, i32
  }
  func.func @transform_2(%arg0: i32, %arg1: i32, %arg2: i32) -> (i32, i32) {
    %c0_i32 = arith.constant 0 : i32
    %c0_i32_0 = arith.constant 0 : i32
    return %c0_i32, %arg1 : i32, i32
  }
  func.func @transform_3(%arg0: i32, %arg1: i32, %arg2: i32) -> (i32, i32) {
    %c0_i32 = arith.constant 0 : i32
    return %arg0, %arg1 : i32, i32
  }
}

</mosaic_0001>

<llo_original>
// kernel: tpu_custom_call.1
$region0: #{tpu_custom_call.1}
  #allocation0 [shape = 'u32[]', space=smem, size = 0x4, offset = 0x4, fixed_abs, tag = 'smem constant byte address 0x4 - core index']
  #allocation1 [shape = 'u32[144,128]{1,0:T(1,128)}', space=vmem, size = 0x12000, scoped, tag = 'internal scratch']
  %s0 = inlined_call_operand.vmem [shape: f32[128,64], index: 0, kind: input, shape index: {}]
  %s1 = inlined_call_operand.vmem [shape: f32[64,128], index: 1, kind: input, shape index: {}]
  %s2 = inlined_call_operand.vmem [shape: f32[1,128], index: 2, kind: input, shape index: {}]
  %s3 = inlined_call_operand.hbm [shape: f32[128,128], index: 3, kind: output, shape index: {}]
  %s4 = sld [smem:[#allocation0]]
  $region22: #{tpu_custom_call.1} parent=0
    _
  %s6 = ssub.s32 1, %s4
  %s7 = scalar_select 0, %s6, %s4
  $region1: #{tpu_custom_call.1} parent=0
    #allocation2 [shape = 'u8[65536]{0}', space=vmem, size = 0x10000, scoped, tag = 'output window, operand 0, single buffered']
    #allocation3 [shape = 's32[1]{0}', space=sflag, size = 0x4, scoped, tag = 'scoped memory for tpu_custom_call.1']
    %8 = vsyncpa [#allocation3], 0
    // Predicated region
    $region2: #{tpu_custom_call.1} parent=1 // pred_check
      _
    $region3: #{tpu_custom_call.1} parent=1 // pred_check_branch
      %10 = sbr.rel (0) target = $region5
    $region4: #{tpu_custom_call.1} parent=1 // pred_region
      _
    $region5: #{tpu_custom_call.1} parent=1 // pred_fallthru
      _
    // Predicated region
    $region6: #{tpu_custom_call.1} parent=1 // pred_check
      _
    $region7: #{tpu_custom_call.1} parent=1 // pred_check_branch
      %12 = sbr.rel (0) target = $region9
    $region8: #{tpu_custom_call.1} parent=1 // pred_region
      _
    $region9: #{tpu_custom_call.1} parent=1 // pred_fallthru
      _
    // Predicated region
    $region10: #{tpu_custom_call.1} parent=1 // pred_check
      _
    $region11: #{tpu_custom_call.1} parent=1 // pred_check_branch
      %14 = sbr.rel (0) target = $region13
    $region12: #{tpu_custom_call.1} parent=1 // pred_region
      _
    $region13: #{tpu_custom_call.1} parent=1 // pred_fallthru
      _
    %v15 = vld [vmem:[%s0] sm:$0xff]
    %v16 = vld [vmem:[%s0 + $0x8] sm:$0xff]
    %v17 = vld [vmem:[%s0 + $0x10] sm:$0xff]
    %v18 = vld [vmem:[%s0 + $0x18] sm:$0xff]
    %v19 = vld [vmem:[%s0 + $0x20] sm:$0xff]
    %v20 = vld [vmem:[%s0 + $0x28] sm:$0xff]
    %v21 = vld [vmem:[%s0 + $0x30] sm:$0xff]
    %v22 = vld [vmem:[%s0 + $0x38] sm:$0xff]
    %v23 = vld [vmem:[%s0 + $0x40] sm:$0xff]
    %v24 = vld [vmem:[%s0 + $0x48] sm:$0xff]
    %v25 = vld [vmem:[%s0 + $0x50] sm:$0xff]
    %v26 = vld [vmem:[%s0 + $0x58] sm:$0xff]
    %v27 = vld [vmem:[%s0 + $0x60] sm:$0xff]
    %v28 = vld [vmem:[%s0 + $0x68] sm:$0xff]
    %v29 = vld [vmem:[%s0 + $0x70] sm:$0xff]
    %v30 = vld [vmem:[%s0 + $0x78] sm:$0xff]
    %v31 = vld [vmem:[%s1] sm:$0xff]
    %v32 = vld [vmem:[%s1 + $0x8] sm:$0xff]
    %v33 = vld [vmem:[%s1 + $0x10] sm:$0xff]
    %v34 = vld [vmem:[%s1 + $0x18] sm:$0xff]
    %v35 = vld [vmem:[%s1 + $0x20] sm:$0xff]
    %v36 = vld [vmem:[%s1 + $0x28] sm:$0xff]
    %v37 = vld [vmem:[%s1 + $0x30] sm:$0xff]
    %v38 = vld [vmem:[%s1 + $0x38] sm:$0xff]
    %v39 = vld [vmem:[%s2] sm:$0x1]
    %v41 = vlaneseq
    %v42 = vshrl.u32 %v41, 7
    %v43 = vsub.s32 0, %v42
    %v44 = vrot.slane %v39, %v43
    %vm46 = vcmask 523264
    %v48 = vsel %vm46, %v15, 0
    %v51 = vsel %vm46, %v16, 0
    %v54 = vsel %vm46, %v17, 0
    %v57 = vsel %vm46, %v18, 0
    %v60 = vsel %vm46, %v19, 0
    %v63 = vsel %vm46, %v20, 0
    %v66 = vsel %vm46, %v21, 0
    %v69 = vsel %vm46, %v22, 0
    %v72 = vsel %vm46, %v23, 0
    %v75 = vsel %vm46, %v24, 0
    %v78 = vsel %vm46, %v25, 0
    %v81 = vsel %vm46, %v26, 0
    %v84 = vsel %vm46, %v27, 0
    %v87 = vsel %vm46, %v28, 0
    %v90 = vsel %vm46, %v29, 0
    %v93 = vsel %vm46, %v30, 0
    %95 = vmatprep.subr.mxu0 0.0
    %96 = vmatpush1.msra.mxu0 0.0
    %97 = vmatprep.subr.mxu0 0.0
    %98 = vmatpush1.msra.mxu0 0.0
    %99 = vmatprep.subr.mxu0 0.0
    %100 = vmatpush1.msra.mxu0 0.0
    %101 = vmatprep.subr.mxu0 0.0
    %102 = vmatpush1.msra.mxu0 0.0
    %103 = vmatprep.subr.mxu0 0.0
    %104 = vmatpush1.msra.mxu0 0.0
    %105 = vmatprep.subr.mxu0 0.0
    %106 = vmatpush1.msra.mxu0 0.0
    %107 = vmatprep.subr.mxu0 0.0
    %108 = vmatpush1.msra.mxu0 0.0
    %109 = vmatprep.subr.mxu0 0.0
    %110 = vmatpush1.msra.mxu0 0.0
    %111 = vmatprep.subr.mxu0 0.0
    %112 = vmatpush1.msra.mxu0 %v38
    %113 = vmatprep.subr.mxu0 0.0
    %114 = vmatpush1.msra.mxu0 %v37
    %115 = vmatprep.subr.mxu0 0.0
    %116 = vmatpush1.msra.mxu0 %v36
    %117 = vmatprep.subr.mxu0 0.0
    %118 = vmatpush1.msra.mxu0 %v35
    %119 = vmatprep.subr.mxu0 0.0
    %120 = vmatpush1.msra.mxu0 %v34
    %121 = vmatprep.subr.mxu0 0.0
    %122 = vmatpush1.msra.mxu0 %v33
    %123 = vmatprep.subr.mxu0 0.0
    %124 = vmatpush1.msra.mxu0 %v32
    %125 = vmatprep.subr.mxu0 0.0
    %126 = vmatpush1.msra.mxu0 %v31
    %127 = vmatprep.subr.mxu0 0.0
    %128 = vmatpush2.msra.mxu0 0.0
    %129 = vmatprep.subr.mxu0 0.0
    %130 = vmatpush2.msra.mxu0 0.0
    %131 = vmatprep.subr.mxu0 0.0
    %132 = vmatpush2.msra.mxu0 0.0
    %133 = vmatprep.subr.mxu0 0.0
    %134 = vmatpush2.msra.mxu0 0.0
    %135 = vmatprep.subr.mxu0 0.0
    %136 = vmatpush2.msra.mxu0 0.0
    %137 = vmatprep.subr.mxu0 0.0
    %138 = vmatpush2.msra.mxu0 0.0
    %139 = vmatprep.subr.mxu0 0.0
    %140 = vmatpush2.msra.mxu0 0.0
    %141 = vmatprep.subr.mxu0 0.0
    %142 = vmatpush2.msra.mxu0 0.0
    %143 = vmatprep.subr.mxu0 0.0
    %144 = vmatpush2.msra.mxu0 0.0
    %145 = vmatprep.subr.mxu0 0.0
    %146 = vmatpush2.msra.mxu0 0.0
    %147 = vmatprep.subr.mxu0 0.0
    %148 = vmatpush2.msra.mxu0 0.0
    %149 = vmatprep.subr.mxu0 0.0
    %150 = vmatpush2.msra.mxu0 0.0
    %151 = vmatprep.subr.mxu0 0.0
    %152 = vmatpush2.msra.mxu0 0.0
    %153 = vmatprep.subr.mxu0 0.0
    %154 = vmatpush2.msra.mxu0 0.0
    %155 = vmatprep.subr.mxu0 0.0
    %156 = vmatpush2.msra.mxu0 0.0
    %157 = vmatprep.subr.mxu0 0.0
    %158 = vmatpush2.msra.mxu0 0.0
    %159 = vmatprep.mubr.f32.mxu0 0.0
    %160 = vmatmul.mubr.f32.gmra.mxu0 %v48
    %v161 = vpop.f32.mrf.mxu0
    %v162 = vadd.f32 %v44, %v161
    %v163 = vpop.f32.mrf.mxu0
    %164 = vmatprep.mubr.f32.mxu0 0.0
    %165 = vmatmul.mubr.f32.gmra.mxu0 %v51
    %v166 = vpop.f32.mrf.mxu0
    %v167 = vadd.f32 %v44, %v166
    %v168 = vpop.f32.mrf.mxu0
    %169 = vmatprep.mubr.f32.mxu0 0.0
    %170 = vmatmul.mubr.f32.gmra.mxu0 %v54
    %v171 = vpop.f32.mrf.mxu0
    %v172 = vadd.f32 %v44, %v171
    %v173 = vpop.f32.mrf.mxu0
    %174 = vmatprep.mubr.f32.mxu0 0.0
    %175 = vmatmul.mubr.f32.gmra.mxu0 %v57
    %v176 = vpop.f32.mrf.mxu0
    %v177 = vadd.f32 %v44, %v176
    %v178 = vpop.f32.mrf.mxu0
    %179 = vmatprep.mubr.f32.mxu0 0.0
    %180 = vmatmul.mubr.f32.gmra.mxu0 %v60
    %v181 = vpop.f32.mrf.mxu0
    %v182 = vadd.f32 %v44, %v181
    %v183 = vpop.f32.mrf.mxu0
    %184 = vmatprep.mubr.f32.mxu0 0.0
    %185 = vmatmul.mubr.f32.gmra.mxu0 %v63
    %v186 = vpop.f32.mrf.mxu0
    %v187 = vadd.f32 %v44, %v186
    %v188 = vpop.f32.mrf.mxu0
    %189 = vmatprep.mubr.f32.mxu0 0.0
    %190 = vmatmul.mubr.f32.gmra.mxu0 %v66
    %v191 = vpop.f32.mrf.mxu0
    %v192 = vadd.f32 %v44, %v191
    %v193 = vpop.f32.mrf.mxu0
    %194 = vmatprep.mubr.f32.mxu0 0.0
    %195 = vmatmul.mubr.f32.gmra.mxu0 %v69
    %v196 = vpop.f32.mrf.mxu0
    %v197 = vadd.f32 %v44, %v196
    %v198 = vpop.f32.mrf.mxu0
    %199 = vmatprep.mubr.f32.mxu0 0.0
    %200 = vmatmul.mubr.f32.gmra.mxu0 %v72
    %v201 = vpop.f32.mrf.mxu0
    %v202 = vadd.f32 %v44, %v201
    %v203 = vpop.f32.mrf.mxu0
    %204 = vmatprep.mubr.f32.mxu0 0.0
    %205 = vmatmul.mubr.f32.gmra.mxu0 %v75
    %v206 = vpop.f32.mrf.mxu0
    %v207 = vadd.f32 %v44, %v206
    %v208 = vpop.f32.mrf.mxu0
    %209 = vmatprep.mubr.f32.mxu0 0.0
    %210 = vmatmul.mubr.f32.gmra.mxu0 %v78
    %v211 = vpop.f32.mrf.mxu0
    %v212 = vadd.f32 %v44, %v211
    %v213 = vpop.f32.mrf.mxu0
    %214 = vmatprep.mubr.f32.mxu0 0.0
    %215 = vmatmul.mubr.f32.gmra.mxu0 %v81
    %v216 = vpop.f32.mrf.mxu0
    %v217 = vadd.f32 %v44, %v216
    %v218 = vpop.f32.mrf.mxu0
    %219 = vmatprep.mubr.f32.mxu0 0.0
    %220 = vmatmul.mubr.f32.gmra.mxu0 %v84
    %v221 = vpop.f32.mrf.mxu0
    %v222 = vadd.f32 %v44, %v221
    %v223 = vpop.f32.mrf.mxu0
    %224 = vmatprep.mubr.f32.mxu0 0.0
    %225 = vmatmul.mubr.f32.gmra.mxu0 %v87
    %v226 = vpop.f32.mrf.mxu0
    %v227 = vadd.f32 %v44, %v226
    %v228 = vpop.f32.mrf.mxu0
    %229 = vmatprep.mubr.f32.mxu0 0.0
    %230 = vmatmul.mubr.f32.gmra.mxu0 %v90
    %v231 = vpop.f32.mrf.mxu0
    %v232 = vadd.f32 %v44, %v231
    %v233 = vpop.f32.mrf.mxu0
    %234 = vmatprep.mubr.f32.mxu0 0.0
    %235 = vmatmul.mubr.f32.gmra.mxu0 %v93
    %v236 = vpop.f32.mrf.mxu0
    %v237 = vadd.f32 %v44, %v236
    %v238 = vpop.f32.mrf.mxu0
    %239 = vdwg.mxu0
    %240 = vst [vmem:[#allocation2] sm:$0xff] %v162
    %241 = vst [vmem:[#allocation2 + $0x8] sm:$0xff] %v167
    %242 = vst [vmem:[#allocation2 + $0x10] sm:$0xff] %v172
    %243 = vst [vmem:[#allocation2 + $0x18] sm:$0xff] %v177
    %244 = vst [vmem:[#allocation2 + $0x20] sm:$0xff] %v182
    %245 = vst [vmem:[#allocation2 + $0x28] sm:$0xff] %v187
    %246 = vst [vmem:[#allocation2 + $0x30] sm:$0xff] %v192
    %247 = vst [vmem:[#allocation2 + $0x38] sm:$0xff] %v197
    %248 = vst [vmem:[#allocation2 + $0x40] sm:$0xff] %v202
    %249 = vst [vmem:[#allocation2 + $0x48] sm:$0xff] %v207
    %250 = vst [vmem:[#allocation2 + $0x50] sm:$0xff] %v212
    %251 = vst [vmem:[#allocation2 + $0x58] sm:$0xff] %v217
    %252 = vst [vmem:[#allocation2 + $0x60] sm:$0xff] %v222
    %253 = vst [vmem:[#allocation2 + $0x68] sm:$0xff] %v227
    %254 = vst [vmem:[#allocation2 + $0x70] sm:$0xff] %v232
    %255 = vst [vmem:[#allocation2 + $0x78] sm:$0xff] %v237
    // Predicated region
    $region14: #{tpu_custom_call.1} parent=1 // pred_check
      _
    $region15: #{tpu_custom_call.1} parent=1 // pred_check_branch
      %257 = sbr.rel (0) target = $region17
    $region16: #{tpu_custom_call.1} parent=1 // pred_region
      %s259 = ssub.s32 2048, 2048
      %260 = vsyncadd [#allocation3], %s259
      %s261 = sshll.u32 [#allocation2], 4
      %s262 = int_to_ptr.vmem [resolvable:$true] %s261
      %267 = dma.vmem_to_hbm [thread:$0]  %s262, 2048, %s3, [#allocation3], 128, 128, 8
    $region17: #{tpu_custom_call.1} parent=1 // pred_fallthru
      _
    // Predicated region
    $region18: #{tpu_custom_call.1} parent=1 // pred_check
      _
    $region19: #{tpu_custom_call.1} parent=1 // pred_check_branch
      %269 = sbr.rel (0) target = $region21
    $region20: #{tpu_custom_call.1} parent=1 // pred_region
      %270 = dma.done [#allocation3], 2048
    $region21: #{tpu_custom_call.1} parent=1 // pred_fallthru
      _
    %271 = vsyncpa [#allocation3], 1

</llo_original>
